<compile_context>
chip_gen: v7x
topology: tpu7x:2x2x1
jax: 0.10.0
libtpu: 0.0.40
codegen_flags: <defaults>
</compile_context>

<pallas_src>
import jax
import jax.numpy as jnp
from jax.experimental import pallas as pl
from jax.experimental.pallas import tpu as pltpu


def _add_pos_emb_kernel(x_ref, pos_ref, pad_ref, out_ref):
    x = x_ref[...]                                     # (bblk, tS, E)
    xf = x.astype(jnp.float32)
    # A time step is padded iff its feature-sum is exactly zero (PyTorch ref).
    rsum = jnp.sum(xf, axis=2, keepdims=True)          # (bblk, tS, 1)
    valid = rsum != 0.0
    pos = pos_ref[...].astype(jnp.float32)             # (tS, E): rows 1..S
    pad = pad_ref[...].astype(jnp.float32)             # (1, E):  row 0
    # Implicit broadcasting: valid (bblk,tS,1), pos (1,tS,E), pad (1,1,E).
    pe = jnp.where(valid, pos[None, :, :], pad[None, :, :])
    out_ref[...] = (xf + pe).astype(out_ref.dtype)


def _choose_tiles(B, S, E, itemsize, target_block_bytes=2 * 1024 * 1024):
    """Pick (bblk, tS): one grid step for small slabs, else ~2 MiB x tiles."""
    row_bytes = E * itemsize
    seq_bytes = S * row_bytes
    total_bytes = B * seq_bytes
    if total_bytes <= target_block_bytes:
        return B, S                                    # single grid step
    if seq_bytes <= target_block_bytes:
        bblk = min(B, max(1, target_block_bytes // seq_bytes))
        return int(bblk), S
    tS = max(8, (target_block_bytes // row_bytes) // 8 * 8)   # sublane-aligned
    return 1, int(min(S, tS))


def add_positional_embedding(x, emb_table):
    """x: (B, S, E); emb_table: (S+1, E), row 0 = padding_idx row."""
    B, S, E = x.shape
    assert emb_table.shape == (S + 1, E)

    pos_table = emb_table[1:, :]      # (S, E): embedding rows for positions 1..S
    pad_row = emb_table[0:1, :]       # (1, E): padding row

    bblk, tS = _choose_tiles(B, S, E, jnp.dtype(x.dtype).itemsize)
    grid = (pl.cdiv(B, bblk), pl.cdiv(S, tS))

    grid_spec = pltpu.PrefetchScalarGridSpec(
        num_scalar_prefetch=0,
        grid=grid,
        in_specs=[
            pl.BlockSpec((bblk, tS, E), lambda b, s: (b, s, 0)),   # x
            pl.BlockSpec((tS, E), lambda b, s: (s, 0)),            # positional rows
            pl.BlockSpec((1, E), lambda b, s: (0, 0)),             # padding row
        ],
        out_specs=pl.BlockSpec((bblk, tS, E), lambda b, s: (b, s, 0)),
    )

    # NOTE: inside a larger jit, input_output_aliases={0: 0} would let the
    # output reuse x's HBM buffer; omitted here so the standalone test can keep
    # using x afterwards without forcing an extra defensive copy.
    return pl.pallas_call(
        _add_pos_emb_kernel,
        out_shape=jax.ShapeDtypeStruct((B, S, E), x.dtype),
        grid_spec=grid_spec,
        compiler_params=pltpu.CompilerParams(
            dimension_semantics=("parallel", "parallel")),
    )(x, pos_table, pad_row)


def _reference(x, emb_table):
    # Pure-JAX mirror of the PyTorch forward.
    B, S, E = x.shape
    mask = jnp.sum(x, axis=2) == 0                     # (B, S) True = padded
    idx = jnp.broadcast_to(jnp.arange(1, S + 1)[None, :], (B, S))
    idx = jnp.where(mask, 0, idx)
    return x + emb_table[idx]


if __name__ == "__main__":
    # sequence_length=8, embedding_dim=32, batch=2
    B, S, E = 2, 8, 32

    key = jax.random.PRNGKey(0)
    k_emb, k_x = jax.random.split(key)

    # nn.Embedding(S+1, E, padding_idx=0): row 0 is zeros.
    emb_table = jax.random.normal(k_emb, (S + 1, E), jnp.float32) * 0.1
    emb_table = emb_table.at[0, :].set(0.0)

    x = jax.random.normal(k_x, (B, S, E), jnp.float32)
    # zero out the last two time steps of the second sample -> padded positions
    x = x.at[1, -2:, :].set(0.0)

    out = add_positional_embedding(x, emb_table)
    jax.block_until_ready(out)

    ref = _reference(x, emb_table)
    assert out.shape == (B, S, E)
    assert out.dtype == x.dtype
    assert jnp.allclose(out, ref, atol=1e-6, rtol=1e-6), "mismatch vs reference"
    print("KERNEL_OK")
</pallas_src>

<mosaic_0001>
module attributes {stable_mosaic.version = 11 : i64} {
  func.func @_add_pos_emb_kernel(%arg0: i32, %arg1: i32, %arg2: memref<2x8x32xf32, #tpu.memory_space<vmem>>, %arg3: memref<8x32xf32, #tpu.memory_space<vmem>>, %arg4: memref<1x32xf32, #tpu.memory_space<vmem>>, %arg5: memref<2x8x32xf32, #tpu.memory_space<vmem>>) attributes {dimension_semantics = [#tpu.dimension_semantics<parallel>, #tpu.dimension_semantics<parallel>], iteration_bounds = array<i64: 1, 1>, scalar_prefetch = 0 : i64, scratch_operands = 0 : i64, tpu.core_type = #tpu.core_type<tc>, window_params = [{transform_indices = @transform_0, window_bounds = array<i64: 2, 8, 32>}, {transform_indices = @transform_1, window_bounds = array<i64: 8, 32>}, {pipeline_mode = #tpu.pipeline_mode<synchronous>, transform_indices = @transform_2, window_bounds = array<i64: 1, 32>}, {transform_indices = @transform_3, window_bounds = array<i64: 2, 8, 32>}]} {
    %c0 = arith.constant 0 : index
    %c0_0 = arith.constant 0 : index
    %c0_1 = arith.constant 0 : index
    %0 = vector.load %arg2[%c0, %c0_0, %c0_1] : memref<2x8x32xf32, #tpu.memory_space<vmem>>, vector<2x8x32xf32>
    %cst = arith.constant dense<0.000000e+00> : vector<2x8xf32>
    %1 = vector.multi_reduction <add>, %0, %cst [2] : vector<2x8x32xf32> to vector<2x8xf32>
    %2 = vector.shape_cast %1 : vector<2x8xf32> to vector<2x8x1xf32>
    %cst_2 = arith.constant 0.000000e+00 : f32
    %3 = vector.broadcast %cst_2 : f32 to vector<2x8x1xf32>
    %4 = arith.cmpf one, %2, %3 : vector<2x8x1xf32>
    %c0_3 = arith.constant 0 : index
    %c0_4 = arith.constant 0 : index
    %5 = vector.load %arg3[%c0_3, %c0_4] : memref<8x32xf32, #tpu.memory_space<vmem>>, vector<8x32xf32>
    %c0_5 = arith.constant 0 : index
    %c0_6 = arith.constant 0 : index
    %6 = vector.load %arg4[%c0_5, %c0_6] : memref<1x32xf32, #tpu.memory_space<vmem>>, vector<1x32xf32>
    %7 = vector.shape_cast %5 : vector<8x32xf32> to vector<1x8x32xf32>
    %8 = vector.shape_cast %6 : vector<1x32xf32> to vector<1x1x32xf32>
    %9 = vector.shape_cast %4 : vector<2x8x1xi1> to vector<2x8x1xi1>
    %10 = vector.broadcast %9 : vector<2x8x1xi1> to vector<2x8x32xi1>
    %11 = vector.shape_cast %7 : vector<1x8x32xf32> to vector<1x8x32xf32>
    %12 = vector.broadcast %11 : vector<1x8x32xf32> to vector<2x8x32xf32>
    %13 = vector.shape_cast %8 : vector<1x1x32xf32> to vector<1x1x32xf32>
    %14 = vector.broadcast %13 : vector<1x1x32xf32> to vector<2x8x32xf32>
    %15 = arith.select %10, %12, %14 : vector<2x8x32xi1>, vector<2x8x32xf32>
    %16 = arith.addf %0, %15 : vector<2x8x32xf32>
    %c0_7 = arith.constant 0 : index
    %c0_8 = arith.constant 0 : index
    %c0_9 = arith.constant 0 : index
    %17 = vector.load %arg5[%c0_7, %c0_8, %c0_9] : memref<2x8x32xf32, #tpu.memory_space<vmem>>, vector<2x8x32xf32>
    tpu.vector_store %arg5[%c0_7, %c0_8, %c0_9], %16 {strides = array<i32>} : memref<2x8x32xf32, #tpu.memory_space<vmem>>, vector<2x8x32xf32>,
    return
  }
  func.func @transform_0(%arg0: i32, %arg1: i32) -> (i32, i32, i32) {
    %c0_i32 = arith.constant 0 : i32
    %c0_i32_0 = arith.constant 0 : i32
    return %arg0, %arg1, %c0_i32 : i32, i32, i32
  }
  func.func @transform_1(%arg0: i32, %arg1: i32) -> (i32, i32) {
    %c0_i32 = arith.constant 0 : i32
    %c0_i32_0 = arith.constant 0 : i32
    return %arg1, %c0_i32 : i32, i32
  }
  func.func @transform_2(%arg0: i32, %arg1: i32) -> (i32, i32) {
    %c0_i32 = arith.constant 0 : i32
    %c0_i32_0 = arith.constant 0 : i32
    %c0_i32_1 = arith.constant 0 : i32
    return %c0_i32, %c0_i32_0 : i32, i32
  }
  func.func @transform_3(%arg0: i32, %arg1: i32) -> (i32, i32, i32) {
    %c0_i32 = arith.constant 0 : i32
    %c0_i32_0 = arith.constant 0 : i32
    return %arg0, %arg1, %c0_i32 : i32, i32, i32
  }
}

</mosaic_0001>

<llo_original>
// kernel: tpu_custom_call.1
$region0: #{tpu_custom_call.1}
  #allocation0 [shape = 'u32[]', space=smem, size = 0x4, offset = 0x4, fixed_abs, tag = 'smem constant byte address 0x4 - core index']
  #allocation1 [shape = 'u32[144,128]{1,0:T(1,128)}', space=vmem, size = 0x12000, scoped, tag = 'internal scratch']
  %s0 = inlined_call_operand.hbm [shape: f32[2,8,32], index: 0, kind: input, shape index: {}]
  %s1 = inlined_call_operand.hbm [shape: f32[8,32], index: 1, kind: input, shape index: {}]
  %s2 = inlined_call_operand.vmem [shape: f32[1,32], index: 2, kind: input, shape index: {}]
  %s3 = inlined_call_operand.hbm [shape: f32[2,8,32], index: 3, kind: output, shape index: {}]
  %s4 = sld [smem:[#allocation0]]
  $region30: #{tpu_custom_call.1} parent=0
    _
  %s6 = ssub.s32 1, %s4
  %s7 = scalar_select 0, %s6, %s4
  $region1: #{tpu_custom_call.1} parent=0
    #allocation2 [shape = 'u8[8192]{0}', space=vmem, size = 0x2000, scoped, tag = 'input window, operand 0, single buffered']
    #allocation3 [shape = 's32[1]{0}', space=sflag, size = 0x4, scoped, tag = 'scoped memory for tpu_custom_call.1']
    #allocation4 [shape = 's32[1]{0}', space=sflag, size = 0x4, scoped, tag = 'scoped memory for tpu_custom_call.1']
    #allocation5 [shape = 'u8[4096]{0}', space=vmem, size = 0x1000, scoped, tag = 'input window, operand 1, single buffered']
    #allocation6 [shape = 's32[1]{0}', space=sflag, size = 0x4, scoped, tag = 'scoped memory for tpu_custom_call.1']
    #allocation7 [shape = 'u8[8192]{0}', space=vmem, size = 0x2000, scoped, tag = 'output window, operand 0, single buffered']
    %8 = vsyncpa [#allocation3], 0
    %9 = vsyncpa [#allocation6], 0
    %10 = vsyncpa [#allocation4], 0
    // Predicated region
    $region2: #{tpu_custom_call.1} parent=1 // pred_check
      _
    $region3: #{tpu_custom_call.1} parent=1 // pred_check_branch
      %12 = sbr.rel (0) target = $region5
    $region4: #{tpu_custom_call.1} parent=1 // pred_region
      %s14 = ssub.s32 256, 256
      %15 = vsyncadd [#allocation3], %s14
      %s16 = sshll.u32 [#allocation2], 4
      %s17 = int_to_ptr.vmem [resolvable:$true] %s16
      %22 = dma.hbm_to_vmem [thread:$0]  %s0, 256, %s17, [#allocation3], 128, 128, 8
    $region5: #{tpu_custom_call.1} parent=1 // pred_fallthru
      _
    // Predicated region
    $region6: #{tpu_custom_call.1} parent=1 // pred_check
      _
    $region7: #{tpu_custom_call.1} parent=1 // pred_check_branch
      %24 = sbr.rel (0) target = $region9
    $region8: #{tpu_custom_call.1} parent=1 // pred_region
      %s26 = ssub.s32 128, 128
      %27 = vsyncadd [#allocation6], %s26
      %s29 = sshll.u32 [#allocation5], 4
      %s30 = int_to_ptr.vmem [resolvable:$true] %s29
      %32 = dma.hbm_to_vmem [thread:$0]  %s1, 128, %s30, [#allocation6]
    $region9: #{tpu_custom_call.1} parent=1 // pred_fallthru
      _
    // Predicated region
    $region10: #{tpu_custom_call.1} parent=1 // pred_check
      _
    $region11: #{tpu_custom_call.1} parent=1 // pred_check_branch
      %34 = sbr.rel (0) target = $region13
    $region12: #{tpu_custom_call.1} parent=1 // pred_region
      _
    $region13: #{tpu_custom_call.1} parent=1 // pred_fallthru
      _
    // Predicated region
    $region14: #{tpu_custom_call.1} parent=1 // pred_check
      _
    $region15: #{tpu_custom_call.1} parent=1 // pred_check_branch
      %36 = sbr.rel (0) target = $region17
    $region16: #{tpu_custom_call.1} parent=1 // pred_region
      %37 = dma.done [#allocation3], 256
    $region17: #{tpu_custom_call.1} parent=1 // pred_fallthru
      _
    // Predicated region
    $region18: #{tpu_custom_call.1} parent=1 // pred_check
      _
    $region19: #{tpu_custom_call.1} parent=1 // pred_check_branch
      %39 = sbr.rel (0) target = $region21
    $region20: #{tpu_custom_call.1} parent=1 // pred_region
      %40 = dma.done [#allocation6], 128
    $region21: #{tpu_custom_call.1} parent=1 // pred_fallthru
      _
    %v41 = vld [vmem:[#allocation2] sm:$0xff]
    %v42 = vld [vmem:[#allocation2 + $0x8] sm:$0xff]
    %vm43 = vcmask 261120
    %v44 = vsel %vm43, %v41, 0.0
    %45 = vadd.xlane.f32.xlu0 %v44
    %v46 = vpop.xlane.xlu0 %45
    %v47 = vsel %vm43, %v42, 0.0
    %48 = vadd.xlane.f32.xlu0 %v47
    %v49 = vpop.xlane.xlu0 %48
    %vm50 = vcmp.ne.f32.partialorder %v46, 0.0
    %vm51 = vcmp.ne.f32.partialorder %v49, 0.0
    %v52 = vld [vmem:[#allocation5] sm:$0xff]
    %v53 = vld [vmem:[%s2] sm:$0x1]
    %v54 = vsel %vm50, 1, 0
    %v55 = vsel %vm51, 1, 0
    %vm56 = vcmp.eq.s32.totalorder %v54, 1
    %vm57 = vcmp.eq.s32.totalorder %v55, 1
    %v59 = vlaneseq
    %v60 = vshrl.u32 %v59, 7
    %v61 = vsub.s32 0, %v60
    %v62 = vrot.slane %v53, %v61
    %v64 = vsel %vm56, %v52, %v62
    %v65 = vsel %vm57, %v52, %v62
    %v66 = vadd.f32 %v41, %v64
    %v67 = vadd.f32 %v42, %v65
    %68 = vst.msk [vmem:[#allocation7] sm:$0xff] %vm43, %v66
    %69 = vst.msk [vmem:[#allocation7 + $0x8] sm:$0xff] %vm43, %v67
    // Predicated region
    $region22: #{tpu_custom_call.1} parent=1 // pred_check
      _
    $region23: #{tpu_custom_call.1} parent=1 // pred_check_branch
      %71 = sbr.rel (0) target = $region25
    $region24: #{tpu_custom_call.1} parent=1 // pred_region
      %s73 = ssub.s32 256, 256
      %74 = vsyncadd [#allocation4], %s73
      %s75 = sshll.u32 [#allocation7], 4
      %s76 = int_to_ptr.vmem [resolvable:$true] %s75
      %81 = dma.vmem_to_hbm [thread:$0]  %s76, 256, %s3, [#allocation4], 128, 128, 8
    $region25: #{tpu_custom_call.1} parent=1 // pred_fallthru
      _
    // Predicated region
    $region26: #{tpu_custom_call.1} parent=1 // pred_check
      _
    $region27: #{tpu_custom_call.1} parent=1 // pred_check_branch
      %83 = sbr.rel (0) target = $region29
    $region28: #{tpu_custom_call.1} parent=1 // pred_region
      %84 = dma.done [#allocation4], 256
    $region29: #{tpu_custom_call.1} parent=1 // pred_fallthru
      _
    %85 = vsyncpa [#allocation3], 1
    %86 = vsyncpa [#allocation6], 1
    %87 = vsyncpa [#allocation4], 1

</llo_original>
